<compile_context>
chip_gen: v5e
topology: v5e:2x2
jax: 0.10.0
libtpu: 0.0.40
codegen_flags: <defaults>
</compile_context>

<pallas_src>
import math
import jax
import jax.numpy as jnp
from jax.experimental import pallas as pl
from jax.experimental.pallas import tpu as pltpu


def _round_up(x, m):
    return (x + m - 1) // m * m


def _embedding_kernel(ch_ref, wd_ref, wband_ref, bc_ref, w1_ref,
                      wgt0_ref, bgt0_ref, wgt1_ref, bgt1_ref, out_ref):
    f32 = jnp.float32
    H = bc_ref.shape[-1]
    Wn = wband_ref.shape[-1] // H

    # ---- char conv2d (kernel (1,K)) as one lane-dense matmul against the
    # block-banded weight: (TL, C*P2) @ (C*P2, Wn*H) -> (TL, Wn*H), bf16 in /
    # f32 accumulation.
    raw = jnp.dot(ch_ref[...], wband_ref[...], preferred_element_type=f32)

    # ---- max over char windows; bias + ReLU commute with the max, so apply
    # them once afterwards (== relu(conv + b) followed by max over dim=3).
    best = raw[:, :H]
    for w in range(1, Wn):                                   # static unroll (Wn = 12)
        best = jnp.maximum(best, raw[:, w * H:(w + 1) * H])
    ch_feat = jnp.maximum(best + bc_ref[...], 0.0)           # (TL, H)

    # ---- conv1d (kernel 1, no bias) on concat([ch_feat, wd], channel dim).
    # w1 rows [0:H] multiply the char features, rows [H:] the word embedding,
    # matching torch.cat([ch_emb, wd_emb], dim=1) ordering.
    w1 = w1_ref[...]
    wd = wd_ref[...].astype(f32)
    x = (jnp.dot(ch_feat, w1[:H, :], preferred_element_type=f32)
         + jnp.dot(wd, w1[H:, :], preferred_element_type=f32))

    # ---- 2-layer highway; gate & transform fused into one (H, 2H) matmul each.
    for wgt_ref, bgt_ref in ((wgt0_ref, bgt0_ref), (wgt1_ref, bgt1_ref)):
        y = jnp.dot(x, wgt_ref[...], preferred_element_type=f32) + bgt_ref[...]
        g = jax.nn.sigmoid(y[:, :H])
        t = jnp.maximum(y[:, H:], 0.0)
        x = g * t + (1.0 - g) * x                            # (TL, H)

    # ---- (TL, H) -> (H, TL) so the store is lane-dense in the (B, H, L)
    # output.  Done on the MXU as identity @ x^T (NT dot_general) instead of an
    # XLU transpose of a lane-padded (TL, 32) tile.
    row = jax.lax.broadcasted_iota(jnp.int32, (H, H), 0)
    col = jax.lax.broadcasted_iota(jnp.int32, (H, H), 1)
    ident = (row == col).astype(f32)
    x_t = jax.lax.dot_general(ident, x, (((1,), (1,)), ((), ())),
                              preferred_element_type=f32)    # (H, TL)
    out_ref[...] = x_t.astype(out_ref.dtype)


def embedding_forward(ch_emb, wd_emb, length, params, *, l_tile=512):
    """ch_emb: (B, L, C, p2), wd_emb: (B, L, p1)  ->  (B, H, L)  (PyTorch layout)."""
    del length  # unused in the reference forward as well
    B, L, C, P2 = ch_emb.shape
    P1 = wd_emb.shape[-1]
    K, _, H = params["wc"].shape
    Wn = C - K + 1
    CP2 = C * P2
    f32, bf16 = jnp.float32, jnp.bfloat16

    # L-tile: as large as possible (<= l_tile), multiple of 16 so the bf16
    # inputs have a legal sublane count; pad L up to a whole number of tiles.
    L16 = _round_up(L, 16)
    TL = min(l_tile, L16)
    L_pad = _round_up(L16, TL)

    # Tokens-first, char axis flattened -> lane-dense input (last dim C*P2=128).
    ch = ch_emb.reshape(B, L, CP2)
    wd = wd_emb
    if L_pad != L:
        ch = jnp.pad(ch, ((0, 0), (0, L_pad - L), (0, 0)))
        wd = jnp.pad(wd, ((0, 0), (0, L_pad - L), (0, 0)))
    ch = ch.astype(bf16)
    wd = wd.astype(bf16)

    # Block-banded conv2d weight (C*P2, Wn*H): column block w holds wc placed at
    # char rows [w, w+K), so one matmul evaluates every conv window at once.
    wc = params["wc"].astype(f32)
    wband = jnp.zeros((C, P2, Wn, H), f32)
    for w in range(Wn):
        wband = wband.at[w:w + K, :, w, :].set(wc)
    wband = wband.reshape(CP2, Wn * H).astype(bf16)

    # Fused highway weights: [gate || transform] -> one (H, 2H) matmul per layer.
    wgt0 = jnp.concatenate([params["wg0"], params["wt0"]], axis=1)
    bgt0 = jnp.concatenate([params["bg0"], params["bt0"]], axis=1)
    wgt1 = jnp.concatenate([params["wg1"], params["wt1"]], axis=1)
    bgt1 = jnp.concatenate([params["bg1"], params["bt1"]], axis=1)

    const2d = lambda b, l: (0, 0)
    grid_spec = pltpu.PrefetchScalarGridSpec(
        num_scalar_prefetch=0,
        grid=(B, L_pad // TL),
        in_specs=[
            # ch is the only per-step-varying heavy input; if its DMA is ever
            # exposed at very large L tiles, add pipeline_mode=pl.Buffered(3).
            pl.BlockSpec((None, TL, CP2), lambda b, l: (b, l, 0)),  # char tokens
            pl.BlockSpec((None, TL, P1), lambda b, l: (b, l, 0)),   # word tokens
            pl.BlockSpec((CP2, Wn * H), const2d),                   # banded conv2d w
            pl.BlockSpec((1, H), const2d),                          # conv2d bias
            pl.BlockSpec((H + P1, H), const2d),                     # conv1d weight
            pl.BlockSpec((H, 2 * H), const2d),                      # highway 0 w
            pl.BlockSpec((1, 2 * H), const2d),                      # highway 0 b
            pl.BlockSpec((H, 2 * H), const2d),                      # highway 1 w
            pl.BlockSpec((1, 2 * H), const2d),                      # highway 1 b
        ],
        out_specs=pl.BlockSpec((None, H, TL), lambda b, l: (b, 0, l)),
    )

    out = pl.pallas_call(
        _embedding_kernel,
        out_shape=jax.ShapeDtypeStruct((B, H, L_pad), f32),
        grid_spec=grid_spec,
        compiler_params=pltpu.CompilerParams(
            dimension_semantics=("parallel", "parallel")),
    )(ch, wd, wband,
      params["bc"].astype(f32), params["w1"].astype(f32),
      wgt0, bgt0, wgt1, bgt1)

    if L_pad != L:
        out = out[:, :, :L]
    return out                                               # (B, H, L)


def init_params(key, p1, p2, hidden, kernel_w=5):
    ks = jax.random.split(key, 12)
    f32 = jnp.float32
    # conv2d: kaiming normal (relu), fan_in = p2 * 1 * kernel_w; bias: default uniform
    fan_in_c = p2 * kernel_w
    wc = jax.random.normal(ks[0], (kernel_w, p2, hidden), f32) * math.sqrt(2.0 / fan_in_c)
    bc = jax.random.uniform(ks[1], (1, hidden), f32,
                            -1.0 / math.sqrt(fan_in_c), 1.0 / math.sqrt(fan_in_c))
    # conv1d: xavier uniform, no bias.  Stored (in=H+p1, out=H); rows [0:H] = char feats.
    lim1 = math.sqrt(6.0 / ((p1 + hidden) + hidden))
    w1 = jax.random.uniform(ks[2], (hidden + p1, hidden), f32, -lim1, lim1)

    def linear(kw, kb):
        lim = 1.0 / math.sqrt(hidden)
        w = jax.random.uniform(kw, (hidden, hidden), f32, -lim, lim)   # (in, out)
        b = jax.random.uniform(kb, (1, hidden), f32, -lim, lim)
        return w, b

    wg0, bg0 = linear(ks[3], ks[4])
    wt0, bt0 = linear(ks[5], ks[6])
    wg1, bg1 = linear(ks[7], ks[8])
    wt1, bt1 = linear(ks[9], ks[10])
    return dict(wc=wc, bc=bc, w1=w1,
                wg0=wg0, bg0=bg0, wt0=wt0, bt0=bt0,
                wg1=wg1, bg1=bg1, wt1=wt1, bt1=bt1)


def reference_forward(ch_emb, wd_emb, params):
    """Pure-JAX reference mirroring the PyTorch forward (eval mode)."""
    B, L, C, P2 = ch_emb.shape
    K, _, H = params["wc"].shape
    Wn = C - K + 1
    conv = jnp.zeros((B, L, Wn, H), jnp.float32)
    for k in range(K):
        conv = conv + jnp.einsum("blwc,ch->blwh",
                                 ch_emb[:, :, k:k + Wn, :], params["wc"][k])
    conv = jax.nn.relu(conv + params["bc"].reshape(1, 1, 1, H))
    ch_feat = conv.max(axis=2)                                   # (B, L, H)
    emb = jnp.concatenate([ch_feat, wd_emb], axis=-1)            # (B, L, H+p1)
    x = emb @ params["w1"]                                       # conv1d k=1, no bias
    for wg, bg, wt, bt in (("wg0", "bg0", "wt0", "bt0"),
                           ("wg1", "bg1", "wt1", "bt1")):
        g = jax.nn.sigmoid(x @ params[wg] + params[bg])
        t = jax.nn.relu(x @ params[wt] + params[bt])
        x = g * t + (1.0 - g) * x
    return x.transpose(0, 2, 1)                                  # (B, H, L)


if __name__ == "__main__":
    # Small shapes consistent with the module: p1 word-emb dim, p2 char-emb dim,
    # 16 chars per word (QANet spec), hidden size H.
    B, L, C = 2, 8, 16
    P1, P2, H = 16, 8, 32

    key = jax.random.PRNGKey(0)
    k_ch, k_wd, k_par = jax.random.split(key, 3)
    ch_emb = jax.random.normal(k_ch, (B, L, C, P2), jnp.float32)   # (B, L, char_len, p2)
    wd_emb = jax.random.normal(k_wd, (B, L, P1), jnp.float32)      # (B, L, p1)
    length = jnp.full((B,), L, jnp.int32)                          # unused (as in PyTorch)

    params = init_params(k_par, P1, P2, H)

    out = embedding_forward(ch_emb, wd_emb, length, params)
    out = jax.block_until_ready(out)
    assert out.shape == (B, H, L), out.shape

    # Compare against a pure-JAX reference fed the same bf16-rounded tensors the
    # kernel sends to the MXU (ch, wd, conv2d weight), so the check stays tight.
    rnd = lambda a: a.astype(jnp.bfloat16).astype(jnp.float32)
    ref_params = dict(params)
    ref_params["wc"] = rnd(params["wc"])
    ref = reference_forward(rnd(ch_emb), rnd(wd_emb), ref_params)
    if not jnp.allclose(out, ref, rtol=2e-3, atol=2e-3):
        err = float(jnp.max(jnp.abs(out - ref)))
        raise AssertionError(
            f"Pallas kernel output mismatch vs JAX reference (max abs err {err})")

    print("KERNEL_OK")
</pallas_src>

<mosaic_0001>
module attributes {stable_mosaic.version = 11 : i64} {
  func.func @_embedding_kernel(%arg0: i32, %arg1: i32, %arg2: memref<1x16x128xbf16, #tpu.memory_space<vmem>>, %arg3: memref<1x16x16xbf16, #tpu.memory_space<vmem>>, %arg4: memref<128x384xbf16, #tpu.memory_space<vmem>>, %arg5: memref<1x32xf32, #tpu.memory_space<vmem>>, %arg6: memref<48x32xf32, #tpu.memory_space<vmem>>, %arg7: memref<32x64xf32, #tpu.memory_space<vmem>>, %arg8: memref<1x64xf32, #tpu.memory_space<vmem>>, %arg9: memref<32x64xf32, #tpu.memory_space<vmem>>, %arg10: memref<1x64xf32, #tpu.memory_space<vmem>>, %arg11: memref<1x32x16xf32, #tpu.memory_space<vmem>>) attributes {dimension_semantics = [#tpu.dimension_semantics<parallel>, #tpu.dimension_semantics<parallel>], iteration_bounds = array<i64: 2, 1>, scalar_prefetch = 0 : i64, scratch_operands = 0 : i64, tpu.core_type = #tpu.core_type<tc>, window_params = [{transform_indices = @transform_0, window_bounds = array<i64: 1, 16, 128>}, {transform_indices = @transform_1, window_bounds = array<i64: 1, 16, 16>}, {pipeline_mode = #tpu.pipeline_mode<synchronous>, transform_indices = @transform_2, window_bounds = array<i64: 128, 384>}, {pipeline_mode = #tpu.pipeline_mode<synchronous>, transform_indices = @transform_3, window_bounds = array<i64: 1, 32>}, {pipeline_mode = #tpu.pipeline_mode<synchronous>, transform_indices = @transform_4, window_bounds = array<i64: 48, 32>}, {pipeline_mode = #tpu.pipeline_mode<synchronous>, transform_indices = @transform_5, window_bounds = array<i64: 32, 64>}, {pipeline_mode = #tpu.pipeline_mode<synchronous>, transform_indices = @transform_6, window_bounds = array<i64: 1, 64>}, {pipeline_mode = #tpu.pipeline_mode<synchronous>, transform_indices = @transform_7, window_bounds = array<i64: 32, 64>}, {pipeline_mode = #tpu.pipeline_mode<synchronous>, transform_indices = @transform_8, window_bounds = array<i64: 1, 64>}, {transform_indices = @transform_9, window_bounds = array<i64: 1, 32, 16>}]} {
    %c0 = arith.constant 0 : index
    %c0_0 = arith.constant 0 : index
    %c0_1 = arith.constant 0 : index
    %0 = vector.load %arg2[%c0, %c0_0, %c0_1] : memref<1x16x128xbf16, #tpu.memory_space<vmem>>, vector<1x16x128xbf16>
    %1 = vector.shape_cast %0 : vector<1x16x128xbf16> to vector<16x128xbf16>
    %c0_2 = arith.constant 0 : index
    %c0_3 = arith.constant 0 : index
    %2 = vector.load %arg4[%c0_2, %c0_3] : memref<128x384xbf16, #tpu.memory_space<vmem>>, vector<128x384xbf16>
    %cst = arith.constant dense<0.000000e+00> : vector<16x384xf32>
    %3 = tpu.matmul %1, %2, %cst {dimension_numbers = #tpu.dot_dimension_numbers<[1], [0], [0], [1], [0, 0, 1, 1], [], []>} : vector<16x128xbf16>, vector<128x384xbf16>, vector<16x384xf32> -> vector<16x384xf32>
    %4 = vector.extract_strided_slice %3 {offsets = [0, 0], sizes = [16, 32], strides = [1, 1]} : vector<16x384xf32> to vector<16x32xf32>
    %5 = vector.extract_strided_slice %3 {offsets = [0, 32], sizes = [16, 32], strides = [1, 1]} : vector<16x384xf32> to vector<16x32xf32>
    %6 = arith.maximumf %4, %5 : vector<16x32xf32>
    %7 = vector.extract_strided_slice %3 {offsets = [0, 64], sizes = [16, 32], strides = [1, 1]} : vector<16x384xf32> to vector<16x32xf32>
    %8 = arith.maximumf %6, %7 : vector<16x32xf32>
    %9 = vector.extract_strided_slice %3 {offsets = [0, 96], sizes = [16, 32], strides = [1, 1]} : vector<16x384xf32> to vector<16x32xf32>
    %10 = arith.maximumf %8, %9 : vector<16x32xf32>
    %11 = vector.extract_strided_slice %3 {offsets = [0, 128], sizes = [16, 32], strides = [1, 1]} : vector<16x384xf32> to vector<16x32xf32>
    %12 = arith.maximumf %10, %11 : vector<16x32xf32>
    %13 = vector.extract_strided_slice %3 {offsets = [0, 160], sizes = [16, 32], strides = [1, 1]} : vector<16x384xf32> to vector<16x32xf32>
    %14 = arith.maximumf %12, %13 : vector<16x32xf32>
    %15 = vector.extract_strided_slice %3 {offsets = [0, 192], sizes = [16, 32], strides = [1, 1]} : vector<16x384xf32> to vector<16x32xf32>
    %16 = arith.maximumf %14, %15 : vector<16x32xf32>
    %17 = vector.extract_strided_slice %3 {offsets = [0, 224], sizes = [16, 32], strides = [1, 1]} : vector<16x384xf32> to vector<16x32xf32>
    %18 = arith.maximumf %16, %17 : vector<16x32xf32>
    %19 = vector.extract_strided_slice %3 {offsets = [0, 256], sizes = [16, 32], strides = [1, 1]} : vector<16x384xf32> to vector<16x32xf32>
    %20 = arith.maximumf %18, %19 : vector<16x32xf32>
    %21 = vector.extract_strided_slice %3 {offsets = [0, 288], sizes = [16, 32], strides = [1, 1]} : vector<16x384xf32> to vector<16x32xf32>
    %22 = arith.maximumf %20, %21 : vector<16x32xf32>
    %23 = vector.extract_strided_slice %3 {offsets = [0, 320], sizes = [16, 32], strides = [1, 1]} : vector<16x384xf32> to vector<16x32xf32>
    %24 = arith.maximumf %22, %23 : vector<16x32xf32>
    %25 = vector.extract_strided_slice %3 {offsets = [0, 352], sizes = [16, 32], strides = [1, 1]} : vector<16x384xf32> to vector<16x32xf32>
    %26 = arith.maximumf %24, %25 : vector<16x32xf32>
    %c0_4 = arith.constant 0 : index
    %c0_5 = arith.constant 0 : index
    %27 = vector.load %arg5[%c0_4, %c0_5] : memref<1x32xf32, #tpu.memory_space<vmem>>, vector<1x32xf32>
    %28 = vector.broadcast %27 : vector<1x32xf32> to vector<16x32xf32>
    %29 = arith.addf %26, %28 : vector<16x32xf32>
    %cst_6 = arith.constant 0.000000e+00 : f32
    %30 = vector.broadcast %cst_6 : f32 to vector<16x32xf32>
    %31 = arith.maximumf %29, %30 : vector<16x32xf32>
    %c0_7 = arith.constant 0 : index
    %c0_8 = arith.constant 0 : index
    %32 = vector.load %arg6[%c0_7, %c0_8] : memref<48x32xf32, #tpu.memory_space<vmem>>, vector<48x32xf32>
    %c0_9 = arith.constant 0 : index
    %c0_10 = arith.constant 0 : index
    %c0_11 = arith.constant 0 : index
    %33 = vector.load %arg3[%c0_9, %c0_10, %c0_11] : memref<1x16x16xbf16, #tpu.memory_space<vmem>>, vector<1x16x16xbf16>
    %34 = vector.shape_cast %33 : vector<1x16x16xbf16> to vector<16x16xbf16>
    %35 = arith.extf %34 : vector<16x16xbf16> to vector<16x16xf32>
    %36 = vector.extract_strided_slice %32 {offsets = [0, 0], sizes = [32, 32], strides = [1, 1]} : vector<48x32xf32> to vector<32x32xf32>
    %cst_12 = arith.constant dense<0.000000e+00> : vector<16x32xf32>
    %37 = tpu.matmul %31, %36, %cst_12 {dimension_numbers = #tpu.dot_dimension_numbers<[1], [0], [0], [1], [0, 0, 1, 1], [], []>} : vector<16x32xf32>, vector<32x32xf32>, vector<16x32xf32> -> vector<16x32xf32>
    %38 = vector.extract_strided_slice %32 {offsets = [32, 0], sizes = [16, 32], strides = [1, 1]} : vector<48x32xf32> to vector<16x32xf32>
    %cst_13 = arith.constant dense<0.000000e+00> : vector<16x32xf32>
    %39 = tpu.matmul %35, %38, %cst_13 {dimension_numbers = #tpu.dot_dimension_numbers<[1], [0], [0], [1], [0, 0, 1, 1], [], []>} : vector<16x16xf32>, vector<16x32xf32>, vector<16x32xf32> -> vector<16x32xf32>
    %40 = arith.addf %37, %39 : vector<16x32xf32>
    %c0_14 = arith.constant 0 : index
    %c0_15 = arith.constant 0 : index
    %41 = vector.load %arg7[%c0_14, %c0_15] : memref<32x64xf32, #tpu.memory_space<vmem>>, vector<32x64xf32>
    %cst_16 = arith.constant dense<0.000000e+00> : vector<16x64xf32>
    %42 = tpu.matmul %40, %41, %cst_16 {dimension_numbers = #tpu.dot_dimension_numbers<[1], [0], [0], [1], [0, 0, 1, 1], [], []>} : vector<16x32xf32>, vector<32x64xf32>, vector<16x64xf32> -> vector<16x64xf32>
    %c0_17 = arith.constant 0 : index
    %c0_18 = arith.constant 0 : index
    %43 = vector.load %arg8[%c0_17, %c0_18] : memref<1x64xf32, #tpu.memory_space<vmem>>, vector<1x64xf32>
    %44 = vector.broadcast %43 : vector<1x64xf32> to vector<16x64xf32>
    %45 = arith.addf %42, %44 : vector<16x64xf32>
    %46 = vector.extract_strided_slice %45 {offsets = [0, 0], sizes = [16, 32], strides = [1, 1]} : vector<16x64xf32> to vector<16x32xf32>
    %47 = arith.negf %46 : vector<16x32xf32>
    %48 = math.exp %47 : vector<16x32xf32>
    %cst_19 = arith.constant 1.000000e+00 : f32
    %49 = vector.broadcast %cst_19 : f32 to vector<16x32xf32>
    %50 = arith.addf %49, %48 : vector<16x32xf32>
    %51 = arith.divf %49, %50 : vector<16x32xf32>
    %52 = vector.extract_strided_slice %45 {offsets = [0, 32], sizes = [16, 32], strides = [1, 1]} : vector<16x64xf32> to vector<16x32xf32>
    %cst_20 = arith.constant 0.000000e+00 : f32
    %53 = vector.broadcast %cst_20 : f32 to vector<16x32xf32>
    %54 = arith.maximumf %52, %53 : vector<16x32xf32>
    %55 = arith.mulf %51, %54 : vector<16x32xf32>
    %cst_21 = arith.constant 1.000000e+00 : f32
    %56 = vector.broadcast %cst_21 : f32 to vector<16x32xf32>
    %57 = arith.subf %56, %51 : vector<16x32xf32>
    %58 = arith.mulf %57, %40 : vector<16x32xf32>
    %59 = arith.addf %55, %58 : vector<16x32xf32>
    %c0_22 = arith.constant 0 : index
    %c0_23 = arith.constant 0 : index
    %60 = vector.load %arg9[%c0_22, %c0_23] : memref<32x64xf32, #tpu.memory_space<vmem>>, vector<32x64xf32>
    %cst_24 = arith.constant dense<0.000000e+00> : vector<16x64xf32>
    %61 = tpu.matmul %59, %60, %cst_24 {dimension_numbers = #tpu.dot_dimension_numbers<[1], [0], [0], [1], [0, 0, 1, 1], [], []>} : vector<16x32xf32>, vector<32x64xf32>, vector<16x64xf32> -> vector<16x64xf32>
    %c0_25 = arith.constant 0 : index
    %c0_26 = arith.constant 0 : index
    %62 = vector.load %arg10[%c0_25, %c0_26] : memref<1x64xf32, #tpu.memory_space<vmem>>, vector<1x64xf32>
    %63 = vector.broadcast %62 : vector<1x64xf32> to vector<16x64xf32>
    %64 = arith.addf %61, %63 : vector<16x64xf32>
    %65 = vector.extract_strided_slice %64 {offsets = [0, 0], sizes = [16, 32], strides = [1, 1]} : vector<16x64xf32> to vector<16x32xf32>
    %66 = arith.negf %65 : vector<16x32xf32>
    %67 = math.exp %66 : vector<16x32xf32>
    %cst_27 = arith.constant 1.000000e+00 : f32
    %68 = vector.broadcast %cst_27 : f32 to vector<16x32xf32>
    %69 = arith.addf %68, %67 : vector<16x32xf32>
    %70 = arith.divf %68, %69 : vector<16x32xf32>
    %71 = vector.extract_strided_slice %64 {offsets = [0, 32], sizes = [16, 32], strides = [1, 1]} : vector<16x64xf32> to vector<16x32xf32>
    %cst_28 = arith.constant 0.000000e+00 : f32
    %72 = vector.broadcast %cst_28 : f32 to vector<16x32xf32>
    %73 = arith.maximumf %71, %72 : vector<16x32xf32>
    %74 = arith.mulf %70, %73 : vector<16x32xf32>
    %cst_29 = arith.constant 1.000000e+00 : f32
    %75 = vector.broadcast %cst_29 : f32 to vector<16x32xf32>
    %76 = arith.subf %75, %70 : vector<16x32xf32>
    %77 = arith.mulf %76, %59 : vector<16x32xf32>
    %78 = arith.addf %74, %77 : vector<16x32xf32>
    %79 = tpu.iota {dimensions = array<i32: 0>} : vector<32x32xi32>
    %80 = tpu.iota {dimensions = array<i32: 1>} : vector<32x32xi32>
    %81 = arith.cmpi eq, %79, %80 : vector<32x32xi32>
    %82 = arith.extui %81 : vector<32x32xi1> to vector<32x32xi32>
    %83 = arith.sitofp %82 : vector<32x32xi32> to vector<32x32xf32>
    %cst_30 = arith.constant dense<0.000000e+00> : vector<32x16xf32>
    %84 = tpu.matmul %83, %78, %cst_30 {dimension_numbers = #tpu.dot_dimension_numbers<[1], [1], [0], [0], [0, 0, 1, 0], [], []>} : vector<32x32xf32>, vector<16x32xf32>, vector<32x16xf32> -> vector<32x16xf32>
    %c0_31 = arith.constant 0 : index
    %c0_32 = arith.constant 0 : index
    %c0_33 = arith.constant 0 : index
    %85 = vector.load %arg11[%c0_31, %c0_32, %c0_33] : memref<1x32x16xf32, #tpu.memory_space<vmem>>, vector<1x32x16xf32>
    %86 = vector.shape_cast %85 : vector<1x32x16xf32> to vector<32x16xf32>
    %87 = vector.shape_cast %84 : vector<32x16xf32> to vector<1x32x16xf32>
    tpu.vector_store %arg11[%c0_31, %c0_32, %c0_33], %87 {strides = array<i32>} : memref<1x32x16xf32, #tpu.memory_space<vmem>>, vector<1x32x16xf32>,
    return
  }
  func.func @transform_0(%arg0: i32, %arg1: i32) -> (i32, i32, i32) {
    %c0_i32 = arith.constant 0 : i32
    %c0_i32_0 = arith.constant 0 : i32
    return %arg0, %arg1, %c0_i32 : i32, i32, i32
  }
  func.func @transform_1(%arg0: i32, %arg1: i32) -> (i32, i32, i32) {
    %c0_i32 = arith.constant 0 : i32
    %c0_i32_0 = arith.constant 0 : i32
    return %arg0, %arg1, %c0_i32 : i32, i32, i32
  }
  func.func @transform_2(%arg0: i32, %arg1: i32) -> (i32, i32) {
    %c0_i32 = arith.constant 0 : i32
    %c0_i32_0 = arith.constant 0 : i32
    %c0_i32_1 = arith.constant 0 : i32
    return %c0_i32, %c0_i32_0 : i32, i32
  }
  func.func @transform_3(%arg0: i32, %arg1: i32) -> (i32, i32) {
    %c0_i32 = arith.constant 0 : i32
    %c0_i32_0 = arith.constant 0 : i32
    %c0_i32_1 = arith.constant 0 : i32
    return %c0_i32, %c0_i32_0 : i32, i32
  }
  func.func @transform_4(%arg0: i32, %arg1: i32) -> (i32, i32) {
    %c0_i32 = arith.constant 0 : i32
    %c0_i32_0 = arith.constant 0 : i32
    %c0_i32_1 = arith.constant 0 : i32
    return %c0_i32, %c0_i32_0 : i32, i32
  }
  func.func @transform_5(%arg0: i32, %arg1: i32) -> (i32, i32) {
    %c0_i32 = arith.constant 0 : i32
    %c0_i32_0 = arith.constant 0 : i32
    %c0_i32_1 = arith.constant 0 : i32
    return %c0_i32, %c0_i32_0 : i32, i32
  }
  func.func @transform_6(%arg0: i32, %arg1: i32) -> (i32, i32) {
    %c0_i32 = arith.constant 0 : i32
    %c0_i32_0 = arith.constant 0 : i32
    %c0_i32_1 = arith.constant 0 : i32
    return %c0_i32, %c0_i32_0 : i32, i32
  }
  func.func @transform_7(%arg0: i32, %arg1: i32) -> (i32, i32) {
    %c0_i32 = arith.constant 0 : i32
    %c0_i32_0 = arith.constant 0 : i32
    %c0_i32_1 = arith.constant 0 : i32
    return %c0_i32, %c0_i32_0 : i32, i32
  }
  func.func @transform_8(%arg0: i32, %arg1: i32) -> (i32, i32) {
    %c0_i32 = arith.constant 0 : i32
    %c0_i32_0 = arith.constant 0 : i32
    %c0_i32_1 = arith.constant 0 : i32
    return %c0_i32, %c0_i32_0 : i32, i32
  }
  func.func @transform_9(%arg0: i32, %arg1: i32) -> (i32, i32, i32) {
    %c0_i32 = arith.constant 0 : i32
    %c0_i32_0 = arith.constant 0 : i32
    return %arg0, %c0_i32, %arg1 : i32, i32, i32
  }
}

</mosaic_0001>

<llo_original>
// kernel: tpu_custom_call.1
$region0: #{tpu_custom_call.1}
  #allocation0 [shape = 'u32[]', space=smem, size = 0x4, offset = 0x4, fixed_abs, tag = 'smem constant byte address 0x4 - core index']
  #allocation1 [shape = 'u32[72,128]{1,0:T(1,128)}', space=vmem, size = 0x9000, scoped, tag = 'internal scratch']
  %s0 = inlined_call_operand.vmem [shape: bf16[2,16,128], index: 0, kind: input, shape index: {}]
  %s1 = inlined_call_operand.hbm [shape: bf16[2,16,16], index: 1, kind: input, shape index: {}]
  %s2 = inlined_call_operand.hbm [shape: bf16[128,384], index: 2, kind: input, shape index: {}]
  %s3 = inlined_call_operand.vmem [shape: f32[1,32], index: 3, kind: input, shape index: {}]
  %s4 = inlined_call_operand.vmem [shape: f32[48,32], index: 4, kind: input, shape index: {}]
  %s5 = inlined_call_operand.vmem [shape: f32[32,64], index: 5, kind: input, shape index: {}]
  %s6 = inlined_call_operand.vmem [shape: f32[1,64], index: 6, kind: input, shape index: {}]
  %s7 = inlined_call_operand.vmem [shape: f32[32,64], index: 7, kind: input, shape index: {}]
  %s8 = inlined_call_operand.vmem [shape: f32[1,64], index: 8, kind: input, shape index: {}]
  %s9 = inlined_call_operand.vmem [shape: f32[2,32,16], index: 9, kind: output, shape index: {}]
  %s10 = sld [smem:[#allocation0]]
  $region77: #{tpu_custom_call.1} parent=0
    _
  %s12 = ssub.s32 1, %s10
  %s13 = scalar_select 0, %s12, %s10
  $region1: #{tpu_custom_call.1} parent=0
    #allocation2 [shape = 'u8[8192]{0}', space=vmem, size = 0x2000, scoped, tag = 'input window, operand 1']
    #allocation3 [shape = 's32[2]{0}', space=sflag, size = 0x8, scoped, tag = 'scoped memory for tpu_custom_call.1']
    #allocation4 [shape = 'u8[98304]{0}', space=vmem, size = 0x18000, scoped, tag = 'input window, operand 2, single buffered']
    #allocation5 [shape = 's32[1]{0}', space=sflag, size = 0x4, scoped, tag = 'scoped memory for tpu_custom_call.1']
    %14 = vsyncpa [#allocation3], 0
    %s15 = scalar_lea.sflag [#allocation3], 1
    %16 = vsyncpa %s15, 0
    %17 = vsyncpa [#allocation5], 0
    loop: start=0, step=1, limit=4
    $region2: #{tpu_custom_call.1} parent=1 // loop_pre_header
      _
    $region3: #{tpu_custom_call.1} parent=1 // loop_header
      %s19 = sphi 0, %s23
      %p20 = scmp.ge.s32.totalorder %s19, 4
      %s26 = sphi 0, %s38
      %s27 = sphi 0, %s34
      %s28 = sphi 0, %s26
      %s29 = sphi 0, %s27
      %s30 = sphi 0, %s28
      %s31 = sphi 0, %s29
      %s43 = sphi 0, %s45
      %s46 = sphi 0, %s43
      %s47 = sphi 0, %s46
      %s63 = sphi 0, %s47
      %s71 = sphi 0, %s73
      %s74 = sphi 0, %s71
      %s75 = sphi 0, %s74
      %s91 = sphi 0, %s75
      %s95 = sphi 0, %s95
      %s97 = sphi 0, %s95
      %s98 = sphi 0, %s97
      %s112 = sphi 0, %s98
      %s116 = sphi 0, %s116
      %s118 = sphi 0, %s116
      %s119 = sphi 0, %s118
      %s133 = sphi 0, %s119
      %s137 = sphi 0, %s137
      %s139 = sphi 0, %s137
      %s140 = sphi 0, %s139
      %s154 = sphi 0, %s140
      %s158 = sphi 0, %s158
      %s160 = sphi 0, %s158
      %s161 = sphi 0, %s160
      %s175 = sphi 0, %s161
      %s179 = sphi 0, %s179
      %s181 = sphi 0, %s179
      %s182 = sphi 0, %s181
      %s196 = sphi 0, %s182
      %s200 = sphi 0, %s200
      %s202 = sphi 0, %s200
      %s203 = sphi 0, %s202
      %s217 = sphi 0, %s203
      %s221 = sphi 0, %s221
      %s223 = sphi 0, %s221
      %s224 = sphi 0, %s223
      %s238 = sphi 0, %s224
      %s246 = sphi 0, %s248
      %s249 = sphi 0, %s246
      %s250 = sphi 0, %s249
      %s266 = sphi 0, %s250
    $region4: #{tpu_custom_call.1} parent=1 // loop_header_branch
      %22 = sbr.rel (%p20) target = $region8
    $region5: #{tpu_custom_call.1} parent=1 // loop_body
      %s24 = ssub.s32 %s19, 1
      %s25 = ssub.s32 %s19, 2
      %s32 = sadd.s32 1, %s27
      %p33 = scmp.ge.s32.totalorder %s32, 1
      %s34 = scalar_select %p33, 0, %s32
      %s35 = sadd.s32 1, %s26
      %s36 = scalar_select %p33, %s35, %s26
      %p37 = scmp.ge.s32.totalorder %s36, 2
      %s38 = scalar_select %p37, 0, %s36
      %s39 = ssub.s32 %s26, %s38
      %s40 = ssub.s32 %s27, %s34
      %s41 = sor.u32 %s39, %s40
      %p42 = scmp.eq.s32.totalorder %s41, 0
      %s44 = sadd.s32 %s43, 1
      %s45 = scalar_select %p42, %s43, %s44
      %p48 = pneg %p42
      %p49 = scmp.eq.s32.totalorder %s19, 1
      %p50 = por %p48, %p49
      %p51 = scmp.ne.s32.totalorder %s43, %s46
      %p52 = scmp.eq.s32.totalorder %s19, 0
      %p53 = por %p51, %p52
      %p54 = scmp.ne.s32.totalorder %s43, %s46
      %p55 = scmp.eq.s32.totalorder %s24, 1
      %p56 = por %p54, %p55
      %p57 = scmp.ne.s32.totalorder %s46, %s47
      %p58 = scmp.eq.s32.totalorder %s24, 0
      %p59 = por %p57, %p58
      %p60 = scmp.ne.s32.totalorder %s46, %s47
      %p61 = scmp.eq.s32.totalorder %s25, 1
      %p62 = por %p60, %p61
      %p64 = scmp.ne.s32.totalorder %s47, %s63
      %p65 = scmp.eq.s32.totalorder %s25, 0
      %p66 = por %p64, %p65
      %s67 = ssub.s32 %s26, %s38
      %s68 = ssub.s32 %s27, %s34
      %s69 = sor.u32 %s67, %s68
      %p70 = scmp.eq.s32.totalorder %s69, 0
      %s72 = sadd.s32 %s71, 1
      %s73 = scalar_select %p70, %s71, %s72
      %p76 = pneg %p70
      %p77 = scmp.eq.s32.totalorder %s19, 1
      %p78 = por %p76, %p77
      %p79 = scmp.ne.s32.totalorder %s71, %s74
      %p80 = scmp.eq.s32.totalorder %s19, 0
      %p81 = por %p79, %p80
      %p82 = scmp.ne.s32.totalorder %s71, %s74
      %p83 = scmp.eq.s32.totalorder %s24, 1
      %p84 = por %p82, %p83
      %p85 = scmp.ne.s32.totalorder %s74, %s75
      %p86 = scmp.eq.s32.totalorder %s24, 0
      %p87 = por %p85, %p86
      %p88 = scmp.ne.s32.totalorder %s74, %s75
      %p89 = scmp.eq.s32.totalorder %s25, 1
      %p90 = por %p88, %p89
      %p92 = scmp.ne.s32.totalorder %s75, %s91
      %p93 = scmp.eq.s32.totalorder %s25, 0
      %p94 = por %p92, %p93
      %s96 = sadd.s32 %s95, 1
      %p99 = scmp.eq.s32.totalorder %s19, 1
      %p100 = scmp.ne.s32.totalorder %s95, %s97
      %p101 = scmp.eq.s32.totalorder %s19, 0
      %p102 = por %p100, %p101
      %p103 = scmp.ne.s32.totalorder %s95, %s97
      %p104 = scmp.eq.s32.totalorder %s24, 1
      %p105 = por %p103, %p104
      %p106 = scmp.ne.s32.totalorder %s97, %s98
      %p107 = scmp.eq.s32.totalorder %s24, 0
      %p108 = por %p106, %p107
      %p109 = scmp.ne.s32.totalorder %s97, %s98
      %p110 = scmp.eq.s32.totalorder %s25, 1
      %p111 = por %p109, %p110
      %p113 = scmp.ne.s32.totalorder %s98, %s112
      %p114 = scmp.eq.s32.totalorder %s25, 0
      %p115 = por %p113, %p114
      %s117 = sadd.s32 %s116, 1
      %p120 = scmp.eq.s32.totalorder %s19, 1
      %p121 = scmp.ne.s32.totalorder %s116, %s118
      %p122 = scmp.eq.s32.totalorder %s19, 0
      %p123 = por %p121, %p122
      %p124 = scmp.ne.s32.totalorder %s116, %s118
      %p125 = scmp.eq.s32.totalorder %s24, 1
      %p126 = por %p124, %p125
      %p127 = scmp.ne.s32.totalorder %s118, %s119
      %p128 = scmp.eq.s32.totalorder %s24, 0
      %p129 = por %p127, %p128
      %p130 = scmp.ne.s32.totalorder %s118, %s119
      %p131 = scmp.eq.s32.totalorder %s25, 1
      %p132 = por %p130, %p131
      %p134 = scmp.ne.s32.totalorder %s119, %s133
      %p135 = scmp.eq.s32.totalorder %s25, 0
      %p136 = por %p134, %p135
      %s138 = sadd.s32 %s137, 1
      %p141 = scmp.eq.s32.totalorder %s19, 1
      %p142 = scmp.ne.s32.totalorder %s137, %s139
      %p143 = scmp.eq.s32.totalorder %s19, 0
      %p144 = por %p142, %p143
      %p145 = scmp.ne.s32.totalorder %s137, %s139
      %p146 = scmp.eq.s32.totalorder %s24, 1
      %p147 = por %p145, %p146
      %p148 = scmp.ne.s32.totalorder %s139, %s140
      %p149 = scmp.eq.s32.totalorder %s24, 0
      %p150 = por %p148, %p149
      %p151 = scmp.ne.s32.totalorder %s139, %s140
      %p152 = scmp.eq.s32.totalorder %s25, 1
      %p153 = por %p151, %p152
      %p155 = scmp.ne.s32.totalorder %s140, %s154
      %p156 = scmp.eq.s32.totalorder %s25, 0
      %p157 = por %p155, %p156
      %s159 = sadd.s32 %s158, 1
      %p162 = scmp.eq.s32.totalorder %s19, 1
      %p163 = scmp.ne.s32.totalorder %s158, %s160
      %p164 = scmp.eq.s32.totalorder %s19, 0
      %p165 = por %p163, %p164
      %p166 = scmp.ne.s32.totalorder %s158, %s160
      %p167 = scmp.eq.s32.totalorder %s24, 1
      %p168 = por %p166, %p167
      %p169 = scmp.ne.s32.totalorder %s160, %s161
      %p170 = scmp.eq.s32.totalorder %s24, 0
      %p171 = por %p169, %p170
      %p172 = scmp.ne.s32.totalorder %s160, %s161
      %p173 = scmp.eq.s32.totalorder %s25, 1
      %p174 = por %p172, %p173
      %p176 = scmp.ne.s32.totalorder %s161, %s175
      %p177 = scmp.eq.s32.totalorder %s25, 0
      %p178 = por %p176, %p177
      %s180 = sadd.s32 %s179, 1
      %p183 = scmp.eq.s32.totalorder %s19, 1
      %p184 = scmp.ne.s32.totalorder %s179, %s181
      %p185 = scmp.eq.s32.totalorder %s19, 0
      %p186 = por %p184, %p185
      %p187 = scmp.ne.s32.totalorder %s179, %s181
      %p188 = scmp.eq.s32.totalorder %s24, 1
      %p189 = por %p187, %p188
      %p190 = scmp.ne.s32.totalorder %s181, %s182
      %p191 = scmp.eq.s32.totalorder %s24, 0
      %p192 = por %p190, %p191
      %p193 = scmp.ne.s32.totalorder %s181, %s182
      %p194 = scmp.eq.s32.totalorder %s25, 1
      %p195 = por %p193, %p194
      %p197 = scmp.ne.s32.totalorder %s182, %s196
      %p198 = scmp.eq.s32.totalorder %s25, 0
      %p199 = por %p197, %p198
      %s201 = sadd.s32 %s200, 1
      %p204 = scmp.eq.s32.totalorder %s19, 1
      %p205 = scmp.ne.s32.totalorder %s200, %s202
      %p206 = scmp.eq.s32.totalorder %s19, 0
      %p207 = por %p205, %p206
      %p208 = scmp.ne.s32.totalorder %s200, %s202
      %p209 = scmp.eq.s32.totalorder %s24, 1
      %p210 = por %p208, %p209
      %p211 = scmp.ne.s32.totalorder %s202, %s203
      %p212 = scmp.eq.s32.totalorder %s24, 0
      %p213 = por %p211, %p212
      %p214 = scmp.ne.s32.totalorder %s202, %s203
      %p215 = scmp.eq.s32.totalorder %s25, 1
      %p216 = por %p214, %p215
      %p218 = scmp.ne.s32.totalorder %s203, %s217
      %p219 = scmp.eq.s32.totalorder %s25, 0
      %p220 = por %p218, %p219
      %s222 = sadd.s32 %s221, 1
      %p225 = scmp.eq.s32.totalorder %s19, 1
      %p226 = scmp.ne.s32.totalorder %s221, %s223
      %p227 = scmp.eq.s32.totalorder %s19, 0
      %p228 = por %p226, %p227
      %p229 = scmp.ne.s32.totalorder %s221, %s223
      %p230 = scmp.eq.s32.totalorder %s24, 1
      %p231 = por %p229, %p230
      %p232 = scmp.ne.s32.totalorder %s223, %s224
      %p233 = scmp.eq.s32.totalorder %s24, 0
      %p234 = por %p232, %p233
      %p235 = scmp.ne.s32.totalorder %s223, %s224
      %p236 = scmp.eq.s32.totalorder %s25, 1
      %p237 = por %p235, %p236
      %p239 = scmp.ne.s32.totalorder %s224, %s238
      %p240 = scmp.eq.s32.totalorder %s25, 0
      %p241 = por %p239, %p240
      %s242 = ssub.s32 %s26, %s38
      %s243 = ssub.s32 %s27, %s34
      %s244 = sor.u32 %s242, %s243
      %p245 = scmp.eq.s32.totalorder %s244, 0
      %s247 = sadd.s32 %s246, 1
      %s248 = scalar_select %p245, %s246, %s247
      %p251 = pneg %p245
      %p252 = scmp.eq.s32.totalorder %s19, 1
      %p253 = por %p251, %p252
      %p254 = scmp.ne.s32.totalorder %s246, %s249
      %p255 = scmp.eq.s32.totalorder %s19, 0
      %p256 = por %p254, %p255
      %p257 = scmp.ne.s32.totalorder %s246, %s249
      %p258 = scmp.eq.s32.totalorder %s24, 1
      %p259 = por %p257, %p258
      %p260 = scmp.ne.s32.totalorder %s249, %s250
      %p261 = scmp.eq.s32.totalorder %s24, 0
      %p262 = por %p260, %p261
      %p263 = scmp.ne.s32.totalorder %s249, %s250
      %p264 = scmp.eq.s32.totalorder %s25, 1
      %p265 = por %p263, %p264
      %p267 = scmp.ne.s32.totalorder %s250, %s266
      %p268 = scmp.eq.s32.totalorder %s25, 0
      %p269 = por %p267, %p268
      %p270 = scmp.le.s32.totalorder 1, %s19
      %p271 = scmp.lt.s32.totalorder %s19, 3
      %p272 = pnand %p270, %p271
      %p273 = pneg %p272
      // Predicated region
      $region9: #{tpu_custom_call.1} parent=5 // pred_check
        _
      $region10: #{tpu_custom_call.1} parent=5 // pred_check_branch
        %275 = sbr.rel (%p272) target = $region12
      $region11: #{tpu_custom_call.1} parent=5 // pred_region
        %s276 = ssub.s32 %s19, 1
        // Predicated region
        $region13: #{tpu_custom_call.1} parent=11 // pred_check
          %p277 = pneg %p108
        $region14: #{tpu_custom_call.1} parent=11 // pred_check_branch
          %279 = sbr.rel (%p277) target = $region16
        $region15: #{tpu_custom_call.1} parent=11 // pred_region
          %281 = vsyncadd [#allocation5], 0
          %s282 = sshll.u32 %s2, 4
          %s283 = int_to_ptr.hbm [resolvable:$true] %s282
          %s284 = sshll.u32 [#allocation4], 4
          %s285 = int_to_ptr.vmem [resolvable:$true] %s284
          %290 = dma.hbm_to_vmem [thread:$0]  %s283, 3072, %s285, [#allocation5], 192, 192, 12
        $region16: #{tpu_custom_call.1} parent=11 // pred_fallthru
          _
        // Predicated region
        $region17: #{tpu_custom_call.1} parent=11 // pred_check
          %p291 = pneg %p129
        $region18: #{tpu_custom_call.1} parent=11 // pred_check_branch
          %293 = sbr.rel (%p291) target = $region20
        $region19: #{tpu_custom_call.1} parent=11 // pred_region
          _
        $region20: #{tpu_custom_call.1} parent=11 // pred_fallthru
          _
        // Predicated region
        $region21: #{tpu_custom_call.1} parent=11 // pred_check
          %p294 = pneg %p150
        $region22: #{tpu_custom_call.1} parent=11 // pred_check_branch
          %296 = sbr.rel (%p294) target = $region24
        $region23: #{tpu_custom_call.1} parent=11 // pred_region
          _
        $region24: #{tpu_custom_call.1} parent=11 // pred_fallthru
          _
        // Predicated region
        $region25: #{tpu_custom_call.1} parent=11 // pred_check
          %p297 = pneg %p171
        $region26: #{tpu_custom_call.1} parent=11 // pred_check_branch
          %299 = sbr.rel (%p297) target = $region28
        $region27: #{tpu_custom_call.1} parent=11 // pred_region
          _
        $region28: #{tpu_custom_call.1} parent=11 // pred_fallthru
          _
        // Predicated region
        $region29: #{tpu_custom_call.1} parent=11 // pred_check
          %p300 = pneg %p192
        $region30: #{tpu_custom_call.1} parent=11 // pred_check_branch
          %302 = sbr.rel (%p300) target = $region32
        $region31: #{tpu_custom_call.1} parent=11 // pred_region
          _
        $region32: #{tpu_custom_call.1} parent=11 // pred_fallthru
          _
        // Predicated region
        $region33: #{tpu_custom_call.1} parent=11 // pred_check
          %p303 = pneg %p213
        $region34: #{tpu_custom_call.1} parent=11 // pred_check_branch
          %305 = sbr.rel (%p303) target = $region36
        $region35: #{tpu_custom_call.1} parent=11 // pred_region
          _
        $region36: #{tpu_custom_call.1} parent=11 // pred_fallthru
          _
        // Predicated region
        $region37: #{tpu_custom_call.1} parent=11 // pred_check
          %p306 = pneg %p234
        $region38: #{tpu_custom_call.1} parent=11 // pred_check_branch
          %308 = sbr.rel (%p306) target = $region40
        $region39: #{tpu_custom_call.1} parent=11 // pred_region
          _
        $region40: #{tpu_custom_call.1} parent=11 // pred_fallthru
          _
      $region12: #{tpu_custom_call.1} parent=5 // pred_fallthru
        _
      %p309 = scmp.lt.s32.totalorder %s19, 2
      // Predicated region
      $region41: #{tpu_custom_call.1} parent=5 // pred_check
        %p310 = pneg %p309
      $region42: #{tpu_custom_call.1} parent=5 // pred_check_branch
        %312 = sbr.rel (%p310) target = $region44
      $region43: #{tpu_custom_call.1} parent=5 // pred_region
        // Predicated region
        $region45: #{tpu_custom_call.1} parent=43 // pred_check
          %p313 = pneg %p53
        $region46: #{tpu_custom_call.1} parent=43 // pred_check_branch
          %315 = sbr.rel (%p313) target = $region48
        $region47: #{tpu_custom_call.1} parent=43 // pred_region
          %s316 = smul.u32 2, %s27
          %p317 = scmp.lt.s32.totalorder %s26, 1
          %s318 = scalar_select %p317, %s26, 1
          %p319 = scmp.lt.s32.totalorder %s316, 1
          %s320 = scalar_select %p319, %s316, 1
          %s321 = smul.addr %s318, 2
          %s322 = sadd.s32 %s320, %s321
          %s323 = smul.addr %s322, 4
          %s324 = scalar_lea.vmem %s0, %s323
          %s325 = smul.u32 2, %s27
        $region48: #{tpu_custom_call.1} parent=43 // pred_fallthru
          _
        // Predicated region
        $region49: #{tpu_custom_call.1} parent=43 // pred_check
          %p326 = pneg %p81
        $region50: #{tpu_custom_call.1} parent=43 // pred_check_branch
          %328 = sbr.rel (%p326) target = $region52
        $region51: #{tpu_custom_call.1} parent=43 // pred_region
          %s329 = sand.u32 %s71, 1
          %s330 = scalar_lea.sflag [#allocation3], %s329
          %s331 = sand.u32 %s71, 1
          %s332 = smul.addr %s331, 8
          %s333 = scalar_lea.vmem [#allocation2], %s332
          %s334 = smul.u32 2, %s27
          %336 = vsyncadd %s330, 0
          %s337 = smul.addr %s26, 2
          %s338 = sadd.s32 %s334, %s337
          %s339 = smul.addr %s338, 4
          %s340 = scalar_lea.hbm %s1, %s339
          %s341 = sshll.u32 %s340, 4
          %s342 = int_to_ptr.hbm [resolvable:$true] %s341
          %s343 = sshll.u32 %s333, 4
          %s344 = int_to_ptr.vmem [resolvable:$true] %s343
          %349 = dma.hbm_to_vmem [thread:$0]  %s342, 128, %s344, %s330, 64, 64, 4
        $region52: #{tpu_custom_call.1} parent=43 // pred_fallthru
          _
      $region44: #{tpu_custom_call.1} parent=5 // pred_fallthru
        _
      %p350 = scmp.le.s32.totalorder 1, %s19
      %p351 = scmp.lt.s32.totalorder %s19, 3
      %p352 = pnand %p350, %p351
      %p353 = pneg %p352
      // Predicated region
      $region53: #{tpu_custom_call.1} parent=5 // pred_check
        _
      $region54: #{tpu_custom_call.1} parent=5 // pred_check_branch
        %355 = sbr.rel (%p352) target = $region56
      $region55: #{tpu_custom_call.1} parent=5 // pred_region
        %s356 = ssub.s32 %s19, 1
        %s357 = sand.u32 %s74, 1
        %s358 = scalar_lea.sflag [#allocation3], %s357
        %s359 = sand.u32 %s74, 1
        %s360 = smul.addr %s359, 8
        %s361 = scalar_lea.vmem [#allocation2], %s360
        // Predicated region
        $region57: #{tpu_custom_call.1} parent=55 // pred_check
          %p362 = pneg %p87
        $region58: #{tpu_custom_call.1} parent=55 // pred_check_branch
          %364 = sbr.rel (%p362) target = $region60
        $region59: #{tpu_custom_call.1} parent=55 // pred_region
          %366 = dma.done %s358, 128
        $region60: #{tpu_custom_call.1} parent=55 // pred_fallthru
          _
        // Predicated region
        $region61: #{tpu_custom_call.1} parent=55 // pred_check
          %p367 = pneg %p108
        $region62: #{tpu_custom_call.1} parent=55 // pred_check_branch
          %369 = sbr.rel (%p367) target = $region64
        $region63: #{tpu_custom_call.1} parent=55 // pred_region
          %371 = dma.done [#allocation5], 3072
        $region64: #{tpu_custom_call.1} parent=55 // pred_fallthru
          _
        %s372 = smul.u32 2, %s29
        %p373 = scmp.lt.s32.totalorder %s28, 1
        %s374 = scalar_select %p373, %s28, 1
        %p375 = scmp.lt.s32.totalorder %s372, 1
        %s376 = scalar_select %p375, %s372, 1
        %s377 = smul.addr %s374, 2
        %s378 = sadd.s32 %s376, %s377
        %s379 = smul.addr %s378, 4
        %s380 = scalar_lea.vmem %s0, %s379
        %p381 = pneg %p59
        %p382 = pneg %p56
        %s383 = sand.u32 %s74, 1
        %s384 = scalar_lea.sflag [#allocation3], %s383
        %s385 = sand.u32 %s74, 1
        %s386 = smul.addr %s385, 8
        %s387 = scalar_lea.vmem [#allocation2], %s386
        %p388 = pneg %p87
        %p389 = pneg %p84
        %p390 = pneg %p108
        %p391 = pneg %p105
        %p392 = pneg %p129
        %p393 = pneg %p126
        %p394 = pneg %p150
        %p395 = pneg %p147
        %p396 = pneg %p171
        %p397 = pneg %p168
        %p398 = pneg %p192
        %p399 = pneg %p189
        %p400 = pneg %p213
        %p401 = pneg %p210
        %p402 = pneg %p234
        %p403 = pneg %p231
        %p404 = pneg %p262
        %p405 = pneg %p259
        %p406 = scmp.lt.s32.totalorder %s28, 1
        %s407 = scalar_select %p406, %s28, 1
        %p408 = scmp.lt.s32.totalorder %s29, 0
        %s409 = scalar_select %p408, %s29, 0
        %s410 = smul.addr %s407, 4
        %s411 = sadd.s32 %s409, %s410
        %s412 = smul.addr %s411, 8
        %s413 = scalar_lea.vmem %s9, %s412
        %s414 = smul.u32 2, %s29
        %p415 = scmp.lt.s32.totalorder %s28, 1
        %s416 = scalar_select %p415, %s28, 1
        %p417 = scmp.lt.s32.totalorder %s414, 1
        %s418 = scalar_select %p417, %s414, 1
        %s419 = smul.addr %s416, 2
        %s420 = sadd.s32 %s418, %s419
        %s421 = smul.addr %s420, 4
        %s422 = scalar_lea.vmem %s0, %s421
        %s423 = smul.u32 2, %s29
        %s424 = smul.u32 2, %s29
        %p425 = scmp.lt.s32.totalorder %s28, 1
        %s426 = scalar_select %p425, %s28, 1
        %p427 = scmp.lt.s32.totalorder %s29, 0
        %s428 = scalar_select %p427, %s29, 0
        %s429 = smul.addr %s426, 4
        %s430 = sadd.s32 %s428, %s429
        %s431 = smul.addr %s430, 8
        %s432 = scalar_lea.vmem %s9, %s431
        %v433 = vld [vmem:[%s422] sm:$0xf]
        %v434 = vld [vmem:[%s422 + $0x4] sm:$0xf]
        %v435 = vld [vmem:[#allocation4] sm:$0xff]
        %v436 = vld [vmem:[#allocation4 + $0x8] sm:$0xf]
        %v437 = vld [vmem:[#allocation4 + $0xc] sm:$0xff]
        %v438 = vld [vmem:[#allocation4 + $0x14] sm:$0xf]
        %v439 = vld [vmem:[#allocation4 + $0x18] sm:$0xff]
        %v440 = vld [vmem:[#allocation4 + $0x20] sm:$0xf]
        %v441 = vld [vmem:[#allocation4 + $0x24] sm:$0xff]
        %v442 = vld [vmem:[#allocation4 + $0x2c] sm:$0xf]
        %v443 = vld [vmem:[#allocation4 + $0x30] sm:$0xff]
        %v444 = vld [vmem:[#allocation4 + $0x38] sm:$0xf]
        %v445 = vld [vmem:[#allocation4 + $0x3c] sm:$0xff]
        %v446 = vld [vmem:[#allocation4 + $0x44] sm:$0xf]
        %v447 = vld [vmem:[#allocation4 + $0x48] sm:$0xff]
        %v448 = vld [vmem:[#allocation4 + $0x50] sm:$0xf]
        %v449 = vld [vmem:[#allocation4 + $0x54] sm:$0xff]
        %v450 = vld [vmem:[#allocation4 + $0x5c] sm:$0xf]
        %v451 = vld [vmem:[#allocation4 + $0x60] sm:$0xff]
        %v452 = vld [vmem:[#allocation4 + $0x68] sm:$0xf]
        %v453 = vld [vmem:[#allocation4 + $0x6c] sm:$0xff]
        %v454 = vld [vmem:[#allocation4 + $0x74] sm:$0xf]
        %v455 = vld [vmem:[#allocation4 + $0x78] sm:$0xff]
        %v456 = vld [vmem:[#allocation4 + $0x80] sm:$0xf]
        %v457 = vld [vmem:[#allocation4 + $0x84] sm:$0xff]
        %v458 = vld [vmem:[#allocation4 + $0x8c] sm:$0xf]
        %v459 = vld [vmem:[#allocation4 + $0x90] sm:$0xff]
        %v460 = vld [vmem:[#allocation4 + $0x98] sm:$0xf]
        %v461 = vld [vmem:[#allocation4 + $0x9c] sm:$0xff]
        %v462 = vld [vmem:[#allocation4 + $0xa4] sm:$0xf]
        %v463 = vld [vmem:[#allocation4 + $0xa8] sm:$0xff]
        %v464 = vld [vmem:[#allocation4 + $0xb0] sm:$0xf]
        %v465 = vld [vmem:[#allocation4 + $0xb4] sm:$0xff]
        %v466 = vld [vmem:[#allocation4 + $0xbc] sm:$0xf]
        %v469 = vunpack.c.l.b16 %v433
        %v470 = vunpack.c.l.b16 %v434
        %v471 = vpack.c.b16 %v470, %v469
        %v505 = vunpack.c.l.b16 %v435
        %v506 = vunpack.c.h.b16 %v435
        %v507 = vunpack.c.l.b16 %v436
        %v508 = vunpack.c.l.b16 %v437
        %v509 = vunpack.c.h.b16 %v437
        %v510 = vunpack.c.l.b16 %v438
        %v511 = vunpack.c.l.b16 %v439
        %v512 = vunpack.c.h.b16 %v439
        %v513 = vunpack.c.l.b16 %v440
        %v514 = vunpack.c.l.b16 %v441
        %v515 = vunpack.c.h.b16 %v441
        %v516 = vunpack.c.l.b16 %v442
        %v517 = vunpack.c.l.b16 %v443
        %v518 = vunpack.c.h.b16 %v443
        %v519 = vunpack.c.l.b16 %v444
        %v520 = vunpack.c.l.b16 %v445
        %v521 = vunpack.c.h.b16 %v445
        %v522 = vunpack.c.l.b16 %v446
        %v523 = vunpack.c.l.b16 %v447
        %v524 = vunpack.c.h.b16 %v447
        %v525 = vunpack.c.l.b16 %v448
        %v526 = vunpack.c.l.b16 %v449
        %v527 = vunpack.c.h.b16 %v449
        %v528 = vunpack.c.l.b16 %v450
        %v529 = vunpack.c.l.b16 %v451
        %v530 = vunpack.c.h.b16 %v451
        %v531 = vunpack.c.l.b16 %v452
        %v532 = vunpack.c.l.b16 %v453
        %v533 = vunpack.c.h.b16 %v453
        %v534 = vunpack.c.l.b16 %v454
        %v535 = vunpack.c.l.b16 %v455
        %v536 = vunpack.c.h.b16 %v455
        %v537 = vunpack.c.l.b16 %v456
        %v538 = vunpack.c.l.b16 %v457
        %v539 = vunpack.c.h.b16 %v457
        %v540 = vunpack.c.l.b16 %v458
        %v541 = vunpack.c.l.b16 %v459
        %v542 = vunpack.c.h.b16 %v459
        %v543 = vunpack.c.l.b16 %v460
        %v544 = vunpack.c.l.b16 %v461
        %v545 = vunpack.c.h.b16 %v461
        %v546 = vunpack.c.l.b16 %v462
        %v547 = vunpack.c.l.b16 %v463
        %v548 = vunpack.c.h.b16 %v463
        %v549 = vunpack.c.l.b16 %v464
        %v550 = vunpack.c.l.b16 %v465
        %v551 = vunpack.c.h.b16 %v465
        %v552 = vunpack.c.l.b16 %v466
        %v553 = vpack.c.b16 %v508, %v505
        %v554 = vpack.c.b16 %v509, %v506
        %v555 = vpack.c.b16 %v510, %v507
        %v556 = vpack.c.b16 %v514, %v511
        %v557 = vpack.c.b16 %v515, %v512
        %v558 = vpack.c.b16 %v516, %v513
        %v559 = vpack.c.b16 %v520, %v517
        %v560 = vpack.c.b16 %v521, %v518
        %v561 = vpack.c.b16 %v522, %v519
        %v562 = vpack.c.b16 %v526, %v523
        %v563 = vpack.c.b16 %v527, %v524
        %v564 = vpack.c.b16 %v528, %v525
        %v565 = vpack.c.b16 %v532, %v529
        %v566 = vpack.c.b16 %v533, %v530
        %v567 = vpack.c.b16 %v534, %v531
        %v568 = vpack.c.b16 %v538, %v535
        %v569 = vpack.c.b16 %v539, %v536
        %v570 = vpack.c.b16 %v540, %v537
        %v571 = vpack.c.b16 %v544, %v541
        %v572 = vpack.c.b16 %v545, %v542
        %v573 = vpack.c.b16 %v546, %v543
        %v574 = vpack.c.b16 %v550, %v547
        %v575 = vpack.c.b16 %v551, %v548
        %v576 = vpack.c.b16 %v552, %v549
        %601 = vmatpush.bf16.msra.mxu0 %v574
        %602 = vmatpush.bf16.msra.mxu0 %v571
        %603 = vmatpush.bf16.msra.mxu0 %v568
        %604 = vmatpush.bf16.msra.mxu0 %v565
        %605 = vmatpush.bf16.msra.mxu0 %v562
        %606 = vmatpush.bf16.msra.mxu0 %v559
        %607 = vmatpush.bf16.msra.mxu0 %v556
        %608 = vmatpush.bf16.msra.mxu0 %v553
        %609 = vmatmul.bf16.gmra.mxu0 %v471
        %v610 = vpop.f32.mrf.mxu0
        %v611 = vadd.f32 0.0, %v610
        %v612 = vpop.f32.mrf.mxu0
        %v613 = vadd.f32 0.0, %v612
        %614 = vdwg.mxu0
        %615 = vmatpush.bf16.msra.mxu0 %v575
        %616 = vmatpush.bf16.msra.mxu0 %v572
        %617 = vmatpush.bf16.msra.mxu0 %v569
        %618 = vmatpush.bf16.msra.mxu0 %v566
        %619 = vmatpush.bf16.msra.mxu0 %v563
        %620 = vmatpush.bf16.msra.mxu0 %v560
        %621 = vmatpush.bf16.msra.mxu0 %v557
        %622 = vmatpush.bf16.msra.mxu0 %v554
        %623 = vmatmul.bf16.gmra.mxu0 %v471
        %v624 = vpop.f32.mrf.mxu0
        %v625 = vadd.f32 0.0, %v624
        %v626 = vpop.f32.mrf.mxu0
        %v627 = vadd.f32 0.0, %v626
        %628 = vdwg.mxu0
        %629 = vmatpush.bf16.msra.mxu0 %v576
        %630 = vmatpush.bf16.msra.mxu0 %v573
        %631 = vmatpush.bf16.msra.mxu0 %v570
        %632 = vmatpush.bf16.msra.mxu0 %v567
        %633 = vmatpush.bf16.msra.mxu0 %v564
        %634 = vmatpush.bf16.msra.mxu0 %v561
        %635 = vmatpush.bf16.msra.mxu0 %v558
        %636 = vmatpush.bf16.msra.mxu0 %v555
        %637 = vmatmul.bf16.gmra.mxu0 %v471
        %v638 = vpop.f32.mrf.mxu0
        %v639 = vadd.f32 0.0, %v638
        %v640 = vpop.f32.mrf.mxu0
        %v641 = vadd.f32 0.0, %v640
        %642 = vdwg.mxu0
        %645 = vrot.lane.b32.xlu0 %v611, 96
        %v646 = vpop.permute.xlu0 %645
        %647 = vrot.lane.b32.xlu0 %v613, 96
        %v648 = vpop.permute.xlu0 %647
        %v651 = vmax.f32 %v611, %v646
        %v652 = vmax.f32 %v613, %v648
        %653 = vrot.lane.b32.xlu0 %v611, 64
        %v654 = vpop.permute.xlu0 %653
        %655 = vrot.lane.b32.xlu0 %v613, 64
        %v656 = vpop.permute.xlu0 %655
        %v659 = vmax.f32 %v651, %v654
        %v660 = vmax.f32 %v652, %v656
        %661 = vrot.lane.b32.xlu0 %v611, 32
        %v662 = vpop.permute.xlu0 %661
        %663 = vrot.lane.b32.xlu0 %v613, 32
        %v664 = vpop.permute.xlu0 %663
        %v667 = vmax.f32 %v659, %v662
        %v668 = vmax.f32 %v660, %v664
        %v669 = vmax.f32 %v667, %v625
        %v670 = vmax.f32 %v668, %v627
        %673 = vrot.lane.b32.xlu0 %v625, 96
        %v674 = vpop.permute.xlu0 %673
        %675 = vrot.lane.b32.xlu0 %v627, 96
        %v676 = vpop.permute.xlu0 %675
        %v679 = vmax.f32 %v669, %v674
        %v680 = vmax.f32 %v670, %v676
        %681 = vrot.lane.b32.xlu0 %v625, 64
        %v682 = vpop.permute.xlu0 %681
        %683 = vrot.lane.b32.xlu0 %v627, 64
        %v684 = vpop.permute.xlu0 %683
        %v687 = vmax.f32 %v679, %v682
        %v688 = vmax.f32 %v680, %v684
        %689 = vrot.lane.b32.xlu0 %v625, 32
        %v690 = vpop.permute.xlu0 %689
        %691 = vrot.lane.b32.xlu0 %v627, 32
        %v692 = vpop.permute.xlu0 %691
        %v695 = vmax.f32 %v687, %v690
        %v696 = vmax.f32 %v688, %v692
        %v697 = vmax.f32 %v695, %v639
        %v698 = vmax.f32 %v696, %v641
        %701 = vrot.lane.b32.xlu0 %v639, 96
        %v702 = vpop.permute.xlu0 %701
        %703 = vrot.lane.b32.xlu0 %v641, 96
        %v704 = vpop.permute.xlu0 %703
        %v707 = vmax.f32 %v697, %v702
        %v708 = vmax.f32 %v698, %v704
        %709 = vrot.lane.b32.xlu0 %v639, 64
        %v710 = vpop.permute.xlu0 %709
        %711 = vrot.lane.b32.xlu0 %v641, 64
        %v712 = vpop.permute.xlu0 %711
        %v715 = vmax.f32 %v707, %v710
        %v716 = vmax.f32 %v708, %v712
        %717 = vrot.lane.b32.xlu0 %v639, 32
        %v718 = vpop.permute.xlu0 %717
        %719 = vrot.lane.b32.xlu0 %v641, 32
        %v720 = vpop.permute.xlu0 %719
        %v723 = vmax.f32 %v715, %v718
        %v724 = vmax.f32 %v716, %v720
        %v725 = vld [vmem:[%s3] sm:$0x1]
        %v727 = vperm.slane %v725, 0
        %v729 = vadd.f32 %v723, %v727
        %v730 = vadd.f32 %v724, %v727
        %v731 = vmax.f32 %v729, 0.0
        %v732 = vmax.f32 %v730, 0.0
        %v733 = vld [vmem:[%s4] sm:$0xff]
        %v734 = vld [vmem:[%s4 + $0x8] sm:$0xff]
        %v735 = vld [vmem:[%s4 + $0x10] sm:$0xff]
        %v736 = vld [vmem:[%s4 + $0x18] sm:$0xff]
        %v737 = vld [vmem:[%s4 + $0x20] sm:$0xff]
        %v738 = vld [vmem:[%s4 + $0x28] sm:$0xff]
        %v739 = vld [vmem:[%s361] sm:$0xf]
        %v740 = vld [vmem:[%s361 + $0x4] sm:$0xf]
        %v741 = vunpack.c.l.bf16 %v739
        %v742 = vunpack.c.l.bf16 %v740
        %vm743 = vcmask 130048
        %v745 = vsel %vm743, %v741, 0
        %v748 = vsel %vm743, %v742, 0
        %750 = vmatpush.msra.mxu0 0.0
        %751 = vmatpush.msra.mxu0 0.0
        %752 = vmatpush.msra.mxu0 0.0
        %753 = vmatpush.msra.mxu0 0.0
        %754 = vmatpush.msra.mxu0 0.0
        %755 = vmatpush.msra.mxu0 0.0
        %756 = vmatpush.msra.mxu0 0.0
        %757 = vmatpush.msra.mxu0 0.0
        %758 = vmatpush.msra.mxu0 0.0
        %759 = vmatpush.msra.mxu0 0.0
        %760 = vmatpush.msra.mxu0 0.0
        %761 = vmatpush.msra.mxu0 0.0
        %762 = vmatpush.msra.mxu0 0.0
        %763 = vmatpush.msra.mxu0 0.0
        %764 = vmatpush.msra.mxu0 %v738
        %765 = vmatpush.msra.mxu0 %v737
        %766 = vmatmul.f32.gmra.mxu0 %v745
        %v767 = vpop.f32.mrf.mxu0
        %v768 = vadd.f32 0.0, %v767
        %769 = vmatmul.f32.gmra.mxu0 %v748
        %v770 = vpop.f32.mrf.mxu0
        %v771 = vadd.f32 0.0, %v770
        %772 = vdwg.mxu0
        %vm773 = vcmask 261120
        %v775 = vsel %vm773, %v731, 0
        %v778 = vsel %vm773, %v732, 0
        %780 = vmatpush.msra.mxu0 0.0
        %781 = vmatpush.msra.mxu0 0.0
        %782 = vmatpush.msra.mxu0 0.0
        %783 = vmatpush.msra.mxu0 0.0
        %784 = vmatpush.msra.mxu0 0.0
        %785 = vmatpush.msra.mxu0 0.0
        %786 = vmatpush.msra.mxu0 0.0
        %787 = vmatpush.msra.mxu0 0.0
        %788 = vmatpush.msra.mxu0 0.0
        %789 = vmatpush.msra.mxu0 0.0
        %790 = vmatpush.msra.mxu0 0.0
        %791 = vmatpush.msra.mxu0 0.0
        %792 = vmatpush.msra.mxu0 %v736
        %793 = vmatpush.msra.mxu0 %v735
        %794 = vmatpush.msra.mxu0 %v734
        %795 = vmatpush.msra.mxu0 %v733
        %796 = vmatmul.f32.gmra.mxu0 %v775
        %v797 = vpop.f32.mrf.mxu0
        %v798 = vadd.f32 %v768, %v797
        %799 = vmatmul.f32.gmra.mxu0 %v778
        %v800 = vpop.f32.mrf.mxu0
        %v801 = vadd.f32 %v771, %v800
        %802 = vdwg.mxu0
        %v803 = vld [vmem:[%s5] sm:$0xff]
        %v804 = vld [vmem:[%s5 + $0x8] sm:$0xff]
        %v805 = vld [vmem:[%s5 + $0x10] sm:$0xff]
        %v806 = vld [vmem:[%s5 + $0x18] sm:$0xff]
        %v807 = vld [vmem:[%s6] sm:$0x1]
        %v809 = vperm.slane %v807, 0
        %v812 = vsel %vm773, %v798, 0
        %v815 = vsel %vm773, %v801, 0
        %817 = vmatpush.msra.mxu0 0.0
        %818 = vmatpush.msra.mxu0 0.0
        %819 = vmatpush.msra.mxu0 0.0
        %820 = vmatpush.msra.mxu0 0.0
        %821 = vmatpush.msra.mxu0 0.0
        %822 = vmatpush.msra.mxu0 0.0
        %823 = vmatpush.msra.mxu0 0.0
        %824 = vmatpush.msra.mxu0 0.0
        %825 = vmatpush.msra.mxu0 0.0
        %826 = vmatpush.msra.mxu0 0.0
        %827 = vmatpush.msra.mxu0 0.0
        %828 = vmatpush.msra.mxu0 0.0
        %829 = vmatpush.msra.mxu0 %v806
        %830 = vmatpush.msra.mxu0 %v805
        %831 = vmatpush.msra.mxu0 %v804
        %832 = vmatpush.msra.mxu0 %v803
        %833 = vmatmul.f32.gmra.mxu0 %v812
        %v834 = vpop.f32.mrf.mxu0
        %v835 = vadd.f32 %v809, %v834
        %836 = vmatmul.f32.gmra.mxu0 %v815
        %v837 = vpop.f32.mrf.mxu0
        %v838 = vadd.f32 %v809, %v837
        %839 = vdwg.mxu0
        %v840 = vxor.u32 %v835, 2147483648
        %v841 = vxor.u32 %v838, 2147483648
        %v842 = vmul.f32 %v840, 1.442695
        %v843 = vpow.pop %v842
        %v844 = vmul.f32 %v841, 1.442695
        %v845 = vpow.pop %v844
        %v846 = vadd.f32 %v843, 1.0
        %v847 = vadd.f32 %v845, 1.0
        %v848 = vrcp.pop %v846
        %v849 = vmul.f32 %v846, %v848
        %v850 = vsub.f32 1.0, %v849
        %v851 = vmul.f32 %v848, %v850
        %v852 = vadd.f32 %v848, %v851
        %vm853 = vweird.f32 %v846
        %vm854 = vweird.f32 %v848
        %vm855 = vmor %vm853, %vm854
        %v856 = vsel %vm855, %v848, %v852
        %v857 = vand.u32 2147483647, %v846
        %vm858 = vcmp.eq.f32.partialorder %v857, 8.507059e+37
        %v859 = vand.u32 %v846, 2147483648
        %v860 = vor.u32 1.1754944e-38, %v859
        %v861 = vsel %vm858, %v860, %v856
        %v862 = vmul.f32 1.0, %v861
        %v863 = vrcp.pop %v847
        %v864 = vmul.f32 %v847, %v863
        %v865 = vsub.f32 1.0, %v864
        %v866 = vmul.f32 %v863, %v865
        %v867 = vadd.f32 %v863, %v866
        %vm868 = vweird.f32 %v847
        %vm869 = vweird.f32 %v863
        %vm870 = vmor %vm868, %vm869
        %v871 = vsel %vm870, %v863, %v867
        %v872 = vand.u32 2147483647, %v847
        %vm873 = vcmp.eq.f32.partialorder %v872, 8.507059e+37
        %v874 = vand.u32 %v847, 2147483648
        %v875 = vor.u32 1.1754944e-38, %v874
        %v876 = vsel %vm873, %v875, %v871
        %v877 = vmul.f32 1.0, %v876
        %v878 = vmax.f32 %v835, 0.0
        %v879 = vmax.f32 %v838, 0.0
        %882 = vrot.lane.b32.xlu0 %v878, 96
        %v883 = vpop.permute.xlu0 %882
        %884 = vrot.lane.b32.xlu0 %v879, 96
        %v885 = vpop.permute.xlu0 %884
        %v888 = vmul.f32 %v862, %v883
        %v889 = vmul.f32 %v877, %v885
        %v890 = vsub.f32 1.0, %v862
        %v891 = vsub.f32 1.0, %v877
        %v892 = vmul.f32 %v890, %v798
        %v893 = vmul.f32 %v891, %v801
        %v894 = vadd.f32 %v888, %v892
        %v895 = vadd.f32 %v889, %v893
        %v896 = vld [vmem:[%s7] sm:$0xff]
        %v897 = vld [vmem:[%s7 + $0x8] sm:$0xff]
        %v898 = vld [vmem:[%s7 + $0x10] sm:$0xff]
        %v899 = vld [vmem:[%s7 + $0x18] sm:$0xff]
        %v900 = vld [vmem:[%s8] sm:$0x1]
        %v902 = vperm.slane %v900, 0
        %v905 = vsel %vm773, %v894, 0
        %v908 = vsel %vm773, %v895, 0
        %910 = vmatpush.msra.mxu0 0.0
        %911 = vmatpush.msra.mxu0 0.0
        %912 = vmatpush.msra.mxu0 0.0
        %913 = vmatpush.msra.mxu0 0.0
        %914 = vmatpush.msra.mxu0 0.0
        %915 = vmatpush.msra.mxu0 0.0
        %916 = vmatpush.msra.mxu0 0.0
        %917 = vmatpush.msra.mxu0 0.0
        %918 = vmatpush.msra.mxu0 0.0
        %919 = vmatpush.msra.mxu0 0.0
        %920 = vmatpush.msra.mxu0 0.0
        %921 = vmatpush.msra.mxu0 0.0
        %922 = vmatpush.msra.mxu0 %v899
        %923 = vmatpush.msra.mxu0 %v898
        %924 = vmatpush.msra.mxu0 %v897
        %925 = vmatpush.msra.mxu0 %v896
        %926 = vmatmul.f32.gmra.mxu0 %v905
        %v927 = vpop.f32.mrf.mxu0
        %v928 = vadd.f32 %v902, %v927
        %929 = vmatmul.f32.gmra.mxu0 %v908
        %v930 = vpop.f32.mrf.mxu0
        %v931 = vadd.f32 %v902, %v930
        %932 = vdwg.mxu0
        %v933 = vxor.u32 %v928, 2147483648
        %v934 = vxor.u32 %v931, 2147483648
        %v935 = vmul.f32 %v933, 1.442695
        %v936 = vpow.pop %v935
        %v937 = vmul.f32 %v934, 1.442695
        %v938 = vpow.pop %v937
        %v939 = vadd.f32 %v936, 1.0
        %v940 = vadd.f32 %v938, 1.0
        %v941 = vrcp.pop %v939
        %v942 = vmul.f32 %v939, %v941
        %v943 = vsub.f32 1.0, %v942
        %v944 = vmul.f32 %v941, %v943
        %v945 = vadd.f32 %v941, %v944
        %vm946 = vweird.f32 %v939
        %vm947 = vweird.f32 %v941
        %vm948 = vmor %vm946, %vm947
        %v949 = vsel %vm948, %v941, %v945
        %v950 = vand.u32 2147483647, %v939
        %vm951 = vcmp.eq.f32.partialorder %v950, 8.507059e+37
        %v952 = vand.u32 %v939, 2147483648
        %v953 = vor.u32 1.1754944e-38, %v952
        %v954 = vsel %vm951, %v953, %v949
        %v955 = vmul.f32 1.0, %v954
        %v956 = vrcp.pop %v940
        %v957 = vmul.f32 %v940, %v956
        %v958 = vsub.f32 1.0, %v957
        %v959 = vmul.f32 %v956, %v958
        %v960 = vadd.f32 %v956, %v959
        %vm961 = vweird.f32 %v940
        %vm962 = vweird.f32 %v956
        %vm963 = vmor %vm961, %vm962
        %v964 = vsel %vm963, %v956, %v960
        %v965 = vand.u32 2147483647, %v940
        %vm966 = vcmp.eq.f32.partialorder %v965, 8.507059e+37
        %v967 = vand.u32 %v940, 2147483648
        %v968 = vor.u32 1.1754944e-38, %v967
        %v969 = vsel %vm966, %v968, %v964
        %v970 = vmul.f32 1.0, %v969
        %v971 = vmax.f32 %v928, 0.0
        %v972 = vmax.f32 %v931, 0.0
        %975 = vrot.lane.b32.xlu0 %v971, 96
        %v976 = vpop.permute.xlu0 %975
        %977 = vrot.lane.b32.xlu0 %v972, 96
        %v978 = vpop.permute.xlu0 %977
        %v981 = vmul.f32 %v955, %v976
        %v982 = vmul.f32 %v970, %v978
        %v983 = vsub.f32 1.0, %v955
        %v984 = vsub.f32 1.0, %v970
        %v985 = vmul.f32 %v983, %v894
        %v986 = vmul.f32 %v984, %v895
        %v987 = vadd.f32 %v981, %v985
        %v988 = vadd.f32 %v982, %v986
        %v989 = vlaneseq
        %v990 = vshrl.u32 %v989, 7
        %v991 = vadd.s32 %v990, 8
        %v992 = vadd.s32 %v990, 16
        %v993 = vadd.s32 %v990, 24
        %v994 = vlaneseq
        %v995 = vand.u32 %v994, 127
        %vm996 = vcmp.eq.s32.totalorder %v990, %v995
        %vm997 = vcmp.eq.s32.totalorder %v991, %v995
        %vm998 = vcmp.eq.s32.totalorder %v992, %v995
        %vm999 = vcmp.eq.s32.totalorder %v993, %v995
        %v1000 = vsel %vm996, 1, 0
        %v1001 = vsel %vm997, 1, 0
        %v1002 = vsel %vm998, 1, 0
        %v1003 = vsel %vm999, 1, 0
        %v1004 = vcvt.s32.f32 %v1000
        %v1005 = vcvt.s32.f32 %v1001
        %v1006 = vcvt.s32.f32 %v1002
        %v1007 = vcvt.s32.f32 %v1003
        %v1009 = vsel %vm773, %v1004, 0
        %v1012 = vsel %vm773, %v1005, 0
        %v1015 = vsel %vm773, %v1006, 0
        %v1018 = vsel %vm773, %v1007, 0
        %v1021 = vsel %vm773, %v987, 0
        %v1024 = vsel %vm773, %v988, 0
        %1026 = vmatpush.xpose.msra.mxu0 0.0
        %1027 = vmatpush.xpose.msra.mxu0 0.0
        %1028 = vmatpush.xpose.msra.mxu0 0.0
        %1029 = vmatpush.xpose.msra.mxu0 0.0
        %1030 = vmatpush.xpose.msra.mxu0 0.0
        %1031 = vmatpush.xpose.msra.mxu0 0.0
        %1032 = vmatpush.xpose.msra.mxu0 0.0
        %1033 = vmatpush.xpose.msra.mxu0 0.0
        %1034 = vmatpush.xpose.msra.mxu0 0.0
        %1035 = vmatpush.xpose.msra.mxu0 0.0
        %1036 = vmatpush.xpose.msra.mxu0 0.0
        %1037 = vmatpush.xpose.msra.mxu0 0.0
        %1038 = vmatpush.xpose.msra.mxu0 0.0
        %1039 = vmatpush.xpose.msra.mxu0 0.0
        %1040 = vmatpush.xpose.msra.mxu0 %v1024
        %1041 = vmatpush.xpose.msra.mxu0 %v1021
        %1042 = vmatmul.f32.gmra.mxu0 %v1009
        %v1043 = vpop.f32.mrf.mxu0
        %v1044 = vadd.f32 0.0, %v1043
        %1045 = vmatmul.f32.gmra.mxu0 %v1012
        %v1046 = vpop.f32.mrf.mxu0
        %v1047 = vadd.f32 0.0, %v1046
        %1048 = vmatmul.f32.gmra.mxu0 %v1015
        %v1049 = vpop.f32.mrf.mxu0
        %v1050 = vadd.f32 0.0, %v1049
        %1051 = vmatmul.f32.gmra.mxu0 %v1018
        %v1052 = vpop.f32.mrf.mxu0
        %v1053 = vadd.f32 0.0, %v1052
        %1054 = vdwg.mxu0
        %1055 = vst.msk [vmem:[%s432] sm:$0xff] %vm743, %v1044
        %1056 = vst.msk [vmem:[%s432 + $0x8] sm:$0xff] %vm743, %v1047
        %1057 = vst.msk [vmem:[%s432 + $0x10] sm:$0xff] %vm743, %v1050
        %1058 = vst.msk [vmem:[%s432 + $0x18] sm:$0xff] %vm743, %v1053
        %p1059 = scmp.lt.s32.totalorder %s28, 1
        %s1060 = scalar_select %p1059, %s28, 1
        %p1061 = scmp.lt.s32.totalorder %s29, 0
        %s1062 = scalar_select %p1061, %s29, 0
        %s1063 = smul.addr %s1060, 4
        %s1064 = sadd.s32 %s1062, %s1063
        %s1065 = smul.addr %s1064, 8
        %s1066 = scalar_lea.vmem %s9, %s1065
        // Predicated region
        $region65: #{tpu_custom_call.1} parent=55 // pred_check
          %p1067 = pneg %p259
        $region66: #{tpu_custom_call.1} parent=55 // pred_check_branch
          %1069 = sbr.rel (%p1067) target = $region68
        $region67: #{tpu_custom_call.1} parent=55 // pred_region
          _
        $region68: #{tpu_custom_call.1} parent=55 // pred_fallthru
          _
      $region56: #{tpu_custom_call.1} parent=5 // pred_fallthru
        _
      %p1070 = scmp.le.s32.totalorder 2, %s19
      // Predicated region
      $region69: #{tpu_custom_call.1} parent=5 // pred_check
        %p1071 = pneg %p1070
      $region70: #{tpu_custom_call.1} parent=5 // pred_check_branch
        %1073 = sbr.rel (%p1071) target = $region72
      $region71: #{tpu_custom_call.1} parent=5 // pred_region
        %s1074 = ssub.s32 %s19, 2
        // Predicated region
        $region73: #{tpu_custom_call.1} parent=71 // pred_check
          %p1075 = pneg %p265
        $region74: #{tpu_custom_call.1} parent=71 // pred_check_branch
          %1077 = sbr.rel (%p1075) target = $region76
        $region75: #{tpu_custom_call.1} parent=71 // pred_region
          %p1078 = scmp.lt.s32.totalorder %s30, 1
          %s1079 = scalar_select %p1078, %s30, 1
          %p1080 = scmp.lt.s32.totalorder %s31, 0
          %s1081 = scalar_select %p1080, %s31, 0
          %s1082 = smul.addr %s1079, 4
          %s1083 = sadd.s32 %s1081, %s1082
          %s1084 = smul.addr %s1083, 8
          %s1085 = scalar_lea.vmem %s9, %s1084
        $region76: #{tpu_custom_call.1} parent=71 // pred_fallthru
          _
      $region72: #{tpu_custom_call.1} parent=5 // pred_fallthru
        _
    $region6: #{tpu_custom_call.1} parent=1 // loop_footer
      %s23 = sadd.s32 1, %s19
    $region7: #{tpu_custom_call.1} parent=1 // loop_footer_branch
      %18 = sbr.rel target = $region3
    $region8: #{tpu_custom_call.1} parent=1 // loop_exit
      _
    %1086 = vsyncpa [#allocation3], 1
    %s1087 = scalar_lea.sflag [#allocation3], 1
    %1088 = vsyncpa %s1087, 1
    %1089 = vsyncpa [#allocation5], 1

</llo_original>
